<compile_context>
chip_gen: v5e
topology: v5e:2x2
jax: 0.10.0
libtpu: 0.0.40
codegen_flags: <defaults>
</compile_context>

<pallas_src>
import functools

import jax
import jax.numpy as jnp
from jax.experimental import pallas as pl
from jax.experimental.pallas import tpu as pltpu

HIDDEN = 128  # conv1_da output channels (fixed by the module definition)


def da_img_head_kernel(x_ref, w1_ref, b1_ref, w2_ref, b2_ref, o_ref, *,
                       cast_bf16, layer2_on_mxu):
    # x_ref : (1, C_in, TL)          VMEM
    # w1_ref: (H, C_in)              VMEM
    # b1_ref: (H, 1)                 VMEM
    # w2_ref: (1, H) if layer2_on_mxu else (H, 1)   VMEM
    # b2_ref: (1, 1)                 SMEM (scalar)
    # o_ref : (1, 1, TL)             VMEM
    x = x_ref[0]                                   # (C_in, TL)
    w1 = w1_ref[...]                               # (H, C_in)
    if cast_bf16:
        x = x.astype(jnp.bfloat16)
        w1 = w1.astype(jnp.bfloat16)

    # Layer 1 on the MXU, f32 accumulation; bias + ReLU on the VPU.
    t = jnp.dot(w1, x, preferred_element_type=jnp.float32)        # (H, TL)
    t = jnp.maximum(t + b1_ref[...], 0.0)

    if layer2_on_mxu:
        # Small C_in regime (VALU-bound): the MXU is nearly idle, so run the
        # (1,H)@(H,TL) weighted reduce there instead of on the VPU.
        t2 = t.astype(jnp.bfloat16) if cast_bf16 else t
        w2 = w2_ref[...].astype(t2.dtype)                          # (1, H)
        out = jnp.dot(w2, t2, preferred_element_type=jnp.float32)  # (1, TL)
    else:
        # HBM-bound regime: keep the M=1 reduce off the MXU (VPU mul + XLU
        # sublane reduce).
        out = jnp.sum(w2_ref[...] * t, axis=0, keepdims=True)      # (1, TL)

    out = out + b2_ref[0, 0]
    o_ref[0] = out.astype(o_ref.dtype)


def _vmem_budgets():
    """(x-tile byte budget, vmem_limit cap) chosen per TPU generation."""
    try:
        cap = int(pltpu.get_tpu_info().vmem_capacity_bytes)
    except Exception:
        cap = 128 << 20
    if cap <= (64 << 20):            # v7x-class: 64 MiB per TensorCore
        return 12 << 20, 48 << 20
    return 32 << 20, 100 << 20       # v5e / v6e: 128 MiB per TensorCore


def _choose_tl(c_in, length, max_tl, x_itemsize, x_budget, n_batch):
    """Lane-tile size: multiple of 256 (128 floor), bounded by the
    double-buffered x-tile budget and max_tl; shrunk if the grid would be too
    small to keep both v7x TensorCores busy."""
    if length <= 128:
        return length                                # full dim (allowed)
    cap = x_budget // (2 * c_in * x_itemsize)
    tl = min(max_tl, cap, length)
    if tl >= 256:
        tl = (tl // 256) * 256
    else:
        tl = 128
    # Grid-balance guard for the 2-TC parts: aim for >= ~4 grid steps.
    num_l = pl.cdiv(length, tl)
    while n_batch * num_l < 4 and tl > 256:
        tl = max(256, ((tl // 2) // 128) * 128)
        num_l = pl.cdiv(length, tl)
    return tl


def da_img_head(x, w1, b1, w2, b2, *, max_tl=4096, use_bf16=True):
    """x: (N, C_in, L) f32/bf16; w1: (H, C_in); b1: (H, 1); w2: (1, H);
    b2: (1, 1).  Returns (N, 1, L) in x.dtype."""
    N, C_in, L = x.shape
    H = w1.shape[0]

    cast_bf16 = use_bf16 or x.dtype == jnp.bfloat16
    layer2_on_mxu = C_in <= 32

    x_itemsize = jnp.dtype(x.dtype).itemsize
    x_budget, vmem_cap = _vmem_budgets()
    TL = _choose_tl(C_in, L, max_tl, x_itemsize, x_budget, N)
    num_l = pl.cdiv(L, TL)

    # conv2 weight layout: row (1,H) for the MXU path, column (H,1) otherwise.
    w2_arg = w2.reshape(1, H) if layer2_on_mxu else w2.reshape(H, 1)
    b2_s = b2.reshape(1, 1)

    def build_and_run(single_buffer_weights):
        # VMEM estimate: x/out double buffers, weights (single- or
        # double-buffered), f32 t intermediate, bf16 staging copies.
        w_buf = 1 if single_buffer_weights else 2
        est = (2 * C_in * TL * x_itemsize              # x double buffer
               + 2 * TL * 4                            # out double buffer
               + w_buf * (H * C_in * 4 + 2 * H * 4)    # w1, b1, w2
               + H * TL * 4                            # t intermediate (f32)
               + (C_in * TL * 2 + H * C_in * 2 + H * TL * 2 if cast_bf16 else 0))
        vmem_limit = int(min(max(2 * est, 32 << 20), vmem_cap))

        def wspec(shape):
            idx = lambda n, l: (0,) * len(shape)
            if single_buffer_weights:
                return pl.BlockSpec(shape, idx, pipeline_mode=pl.Buffered(1))
            return pl.BlockSpec(shape, idx)

        call = pl.pallas_call(
            functools.partial(da_img_head_kernel,
                              cast_bf16=cast_bf16,
                              layer2_on_mxu=layer2_on_mxu),
            out_shape=jax.ShapeDtypeStruct((N, 1, L), x.dtype),
            grid_spec=pltpu.PrefetchScalarGridSpec(
                num_scalar_prefetch=0,
                grid=(N, num_l),
                in_specs=[
                    pl.BlockSpec((1, C_in, TL), lambda n, l: (n, 0, l)),
                    wspec((H, C_in)),                       # w1 (constant)
                    wspec((H, 1)),                          # b1 (constant)
                    wspec(w2_arg.shape),                    # w2 (constant)
                    pl.BlockSpec(memory_space=pltpu.MemorySpace.SMEM),  # b2
                ],
                out_specs=pl.BlockSpec((1, 1, TL), lambda n, l: (n, 0, l)),
            ),
            compiler_params=pltpu.CompilerParams(
                dimension_semantics=("parallel", "parallel"),
                vmem_limit_bytes=vmem_limit,
            ),
        )
        return call(x, w1, b1, w2_arg, b2_s)

    try:
        return jax.block_until_ready(build_and_run(True))
    except Exception:
        # Fallback: default (double-buffered) weight specs.
        return jax.block_until_ready(build_and_run(False))


def init_params(key, in_channels, hidden=HIDDEN):
    # Matches: torch.nn.init.normal_(weight, std=0.001); constant_(bias, 0)
    k1, k2 = jax.random.split(key)
    w1 = 0.001 * jax.random.normal(k1, (hidden, in_channels), dtype=jnp.float32)
    b1 = jnp.zeros((hidden, 1), dtype=jnp.float32)
    w2 = 0.001 * jax.random.normal(k2, (1, hidden), dtype=jnp.float32)
    b2 = jnp.zeros((1, 1), dtype=jnp.float32)
    return w1, b1, w2, b2


if __name__ == "__main__":
    key = jax.random.PRNGKey(0)
    kx, kp = jax.random.split(key)

    # Small shapes; L=520 is not a multiple of the 256 lane tile, so this
    # exercises multiple lane tiles and the partial-last-block path (no pad).
    N, C_in, L = 2, 4, 520
    x = jax.random.normal(kx, (N, C_in, L), dtype=jnp.float32)
    w1, b1, w2, b2 = init_params(kp, C_in)

    out = da_img_head(x, w1, b1, w2, b2, max_tl=256)
    out = jax.block_until_ready(out)

    # Pure-JAX f32 reference (same math as the PyTorch forward).
    t_ref = jnp.maximum(jnp.einsum("oc,ncl->nol", w1, x) + b1[None], 0.0)
    ref = jnp.einsum("oc,ncl->nol", w2, t_ref) + b2[None]

    assert out.shape == (N, 1, L)
    # Layer 1 (and the layer-2 matmul operands) run in bf16 on the MXU with
    # f32 accumulation, so the tolerance is loosened vs. a pure-f32 compare.
    assert jnp.allclose(out, ref, atol=2e-5, rtol=5e-2), float(
        jnp.max(jnp.abs(out - ref)))

    print("KERNEL_OK")
</pallas_src>

<mosaic_0001>
module attributes {stable_mosaic.version = 11 : i64} {
  func.func @da_img_head_kernel(%arg0: i32, %arg1: i32, %arg2: memref<1x4x256xf32, #tpu.memory_space<vmem>>, %arg3: memref<128x4xf32, #tpu.memory_space<vmem>>, %arg4: memref<128x1xf32, #tpu.memory_space<vmem>>, %arg5: memref<1x128xf32, #tpu.memory_space<vmem>>, %arg6: memref<1x1xf32, #tpu.memory_space<smem>>, %arg7: memref<1x1x256xf32, #tpu.memory_space<vmem>>) attributes {dimension_semantics = [#tpu.dimension_semantics<parallel>, #tpu.dimension_semantics<parallel>], iteration_bounds = array<i64: 2, 3>, scalar_prefetch = 0 : i64, scratch_operands = 0 : i64, tpu.core_type = #tpu.core_type<tc>, window_params = [{transform_indices = @transform_0, window_bounds = array<i64: 1, 4, 256>}, {pipeline_mode = #tpu.pipeline_mode<synchronous>, transform_indices = @transform_1, window_bounds = array<i64: 128, 4>}, {pipeline_mode = #tpu.pipeline_mode<synchronous>, transform_indices = @transform_2, window_bounds = array<i64: 128, 1>}, {pipeline_mode = #tpu.pipeline_mode<synchronous>, transform_indices = @transform_3, window_bounds = array<i64: 1, 128>}, {transform_indices = @transform_4, window_bounds = array<i64: 1, 1>}, {transform_indices = @transform_5, window_bounds = array<i64: 1, 1, 256>}]} {
    %c0 = arith.constant 0 : index
    %c0_0 = arith.constant 0 : index
    %c0_1 = arith.constant 0 : index
    %0 = vector.load %arg2[%c0, %c0_0, %c0_1] : memref<1x4x256xf32, #tpu.memory_space<vmem>>, vector<1x4x256xf32>
    %1 = vector.shape_cast %0 : vector<1x4x256xf32> to vector<4x256xf32>
    %c0_2 = arith.constant 0 : index
    %c0_3 = arith.constant 0 : index
    %2 = vector.load %arg3[%c0_2, %c0_3] : memref<128x4xf32, #tpu.memory_space<vmem>>, vector<128x4xf32>
    %3 = arith.truncf %1 : vector<4x256xf32> to vector<4x256xbf16>
    %4 = arith.truncf %2 : vector<128x4xf32> to vector<128x4xbf16>
    %cst = arith.constant dense<0.000000e+00> : vector<128x256xf32>
    %5 = tpu.matmul %4, %3, %cst {dimension_numbers = #tpu.dot_dimension_numbers<[1], [0], [0], [1], [0, 0, 1, 1], [], []>} : vector<128x4xbf16>, vector<4x256xbf16>, vector<128x256xf32> -> vector<128x256xf32>
    %c0_4 = arith.constant 0 : index
    %c0_5 = arith.constant 0 : index
    %6 = vector.load %arg4[%c0_4, %c0_5] : memref<128x1xf32, #tpu.memory_space<vmem>>, vector<128x1xf32>
    %7 = vector.broadcast %6 : vector<128x1xf32> to vector<128x256xf32>
    %8 = arith.addf %5, %7 : vector<128x256xf32>
    %cst_6 = arith.constant 0.000000e+00 : f32
    %9 = vector.broadcast %cst_6 : f32 to vector<128x256xf32>
    %10 = arith.maximumf %8, %9 : vector<128x256xf32>
    %11 = arith.truncf %10 : vector<128x256xf32> to vector<128x256xbf16>
    %c0_7 = arith.constant 0 : index
    %c0_8 = arith.constant 0 : index
    %12 = vector.load %arg5[%c0_7, %c0_8] : memref<1x128xf32, #tpu.memory_space<vmem>>, vector<1x128xf32>
    %13 = arith.truncf %12 : vector<1x128xf32> to vector<1x128xbf16>
    %cst_9 = arith.constant dense<0.000000e+00> : vector<1x256xf32>
    %14 = tpu.matmul %13, %11, %cst_9 {dimension_numbers = #tpu.dot_dimension_numbers<[1], [0], [0], [1], [0, 0, 1, 1], [], []>} : vector<1x128xbf16>, vector<128x256xbf16>, vector<1x256xf32> -> vector<1x256xf32>
    %c0_10 = arith.constant 0 : index
    %c0_11 = arith.constant 0 : index
    %15 = memref.load %arg6[%c0_10, %c0_11] : memref<1x1xf32, #tpu.memory_space<smem>>
    %16 = vector.broadcast %15 : f32 to vector<1x256xf32>
    %17 = arith.addf %14, %16 : vector<1x256xf32>
    %c0_12 = arith.constant 0 : index
    %c0_13 = arith.constant 0 : index
    %c0_14 = arith.constant 0 : index
    %18 = vector.load %arg7[%c0_12, %c0_13, %c0_14] : memref<1x1x256xf32, #tpu.memory_space<vmem>>, vector<1x1x256xf32>
    %19 = vector.shape_cast %18 : vector<1x1x256xf32> to vector<1x256xf32>
    %20 = vector.shape_cast %17 : vector<1x256xf32> to vector<1x1x256xf32>
    tpu.vector_store %arg7[%c0_12, %c0_13, %c0_14], %20 {strides = array<i32>} : memref<1x1x256xf32, #tpu.memory_space<vmem>>, vector<1x1x256xf32>,
    return
  }
  func.func @transform_0(%arg0: i32, %arg1: i32) -> (i32, i32, i32) {
    %c0_i32 = arith.constant 0 : i32
    %c0_i32_0 = arith.constant 0 : i32
    return %arg0, %c0_i32, %arg1 : i32, i32, i32
  }
  func.func @transform_1(%arg0: i32, %arg1: i32) -> (i32, i32) {
    %c0_i32 = arith.constant 0 : i32
    %c0_i32_0 = arith.constant 0 : i32
    %c0_i32_1 = arith.constant 0 : i32
    return %c0_i32, %c0_i32_0 : i32, i32
  }
  func.func @transform_2(%arg0: i32, %arg1: i32) -> (i32, i32) {
    %c0_i32 = arith.constant 0 : i32
    %c0_i32_0 = arith.constant 0 : i32
    %c0_i32_1 = arith.constant 0 : i32
    return %c0_i32, %c0_i32_0 : i32, i32
  }
  func.func @transform_3(%arg0: i32, %arg1: i32) -> (i32, i32) {
    %c0_i32 = arith.constant 0 : i32
    %c0_i32_0 = arith.constant 0 : i32
    %c0_i32_1 = arith.constant 0 : i32
    return %c0_i32, %c0_i32_0 : i32, i32
  }
  func.func @transform_4(%arg0: i32, %arg1: i32) -> (i32, i32) {
    %c0_i32 = arith.constant 0 : i32
    %c0_i32_0 = arith.constant 0 : i32
    %c0_i32_1 = arith.constant 0 : i32
    return %c0_i32, %c0_i32_0 : i32, i32
  }
  func.func @transform_5(%arg0: i32, %arg1: i32) -> (i32, i32, i32) {
    %c0_i32 = arith.constant 0 : i32
    %c0_i32_0 = arith.constant 0 : i32
    return %arg0, %c0_i32, %arg1 : i32, i32, i32
  }
}

module attributes {stable_mosaic.version = 11 : i64} {
  func.func @da_img_head_kernel(%arg0: i32, %arg1: i32, %arg2: memref<1x4x256xf32, #tpu.memory_space<vmem>>, %arg3: memref<128x4xf32, #tpu.memory_space<vmem>>, %arg4: memref<128x1xf32, #tpu.memory_space<vmem>>, %arg5: memref<1x128xf32, #tpu.memory_space<vmem>>, %arg6: memref<1x1xf32, #tpu.memory_space<smem>>, %arg7: memref<1x1x256xf32, #tpu.memory_space<vmem>>) attributes {dimension_semantics = [#tpu.dimension_semantics<parallel>, #tpu.dimension_semantics<parallel>], iteration_bounds = array<i64: 2, 3>, scalar_prefetch = 0 : i64, scratch_operands = 0 : i64, tpu.core_type = #tpu.core_type<tc>, window_params = [{transform_indices = @transform_0, window_bounds = array<i64: 1, 4, 256>}, {pipeline_mode = #tpu.pipeline_mode<synchronous>, transform_indices = @transform_1, window_bounds = array<i64: 128, 4>}, {pipeline_mode = #tpu.pipeline_mode<synchronous>, transform_indices = @transform_2, window_bounds = array<i64: 128, 1>}, {pipeline_mode = #tpu.pipeline_mode<synchronous>, transform_indices = @transform_3, window_bounds = array<i64: 1, 128>}, {transform_indices = @transform_4, window_bounds = array<i64: 1, 1>}, {transform_indices = @transform_5, window_bounds = array<i64: 1, 1, 256>}]} {
    %c0 = arith.constant 0 : index
    %c0_0 = arith.constant 0 : index
    %c0_1 = arith.constant 0 : index
    %0 = vector.load %arg2[%c0, %c0_0, %c0_1] : memref<1x4x256xf32, #tpu.memory_space<vmem>>, vector<1x4x256xf32>
    %1 = vector.shape_cast %0 : vector<1x4x256xf32> to vector<4x256xf32>
    %c0_2 = arith.constant 0 : index
    %c0_3 = arith.constant 0 : index
    %2 = vector.load %arg3[%c0_2, %c0_3] : memref<128x4xf32, #tpu.memory_space<vmem>>, vector<128x4xf32>
    %3 = arith.truncf %1 : vector<4x256xf32> to vector<4x256xbf16>
    %4 = arith.truncf %2 : vector<128x4xf32> to vector<128x4xbf16>
    %cst = arith.constant dense<0.000000e+00> : vector<128x256xf32>
    %5 = tpu.matmul %4, %3, %cst {dimension_numbers = #tpu.dot_dimension_numbers<[1], [0], [0], [1], [0, 0, 1, 1], [], []>} : vector<128x4xbf16>, vector<4x256xbf16>, vector<128x256xf32> -> vector<128x256xf32>
    %c0_4 = arith.constant 0 : index
    %c0_5 = arith.constant 0 : index
    %6 = vector.load %arg4[%c0_4, %c0_5] : memref<128x1xf32, #tpu.memory_space<vmem>>, vector<128x1xf32>
    %7 = vector.broadcast %6 : vector<128x1xf32> to vector<128x256xf32>
    %8 = arith.addf %5, %7 : vector<128x256xf32>
    %cst_6 = arith.constant 0.000000e+00 : f32
    %9 = vector.broadcast %cst_6 : f32 to vector<128x256xf32>
    %10 = arith.maximumf %8, %9 : vector<128x256xf32>
    %11 = arith.truncf %10 : vector<128x256xf32> to vector<128x256xbf16>
    %c0_7 = arith.constant 0 : index
    %c0_8 = arith.constant 0 : index
    %12 = vector.load %arg5[%c0_7, %c0_8] : memref<1x128xf32, #tpu.memory_space<vmem>>, vector<1x128xf32>
    %13 = arith.truncf %12 : vector<1x128xf32> to vector<1x128xbf16>
    %cst_9 = arith.constant dense<0.000000e+00> : vector<1x256xf32>
    %14 = tpu.matmul %13, %11, %cst_9 {dimension_numbers = #tpu.dot_dimension_numbers<[1], [0], [0], [1], [0, 0, 1, 1], [], []>} : vector<1x128xbf16>, vector<128x256xbf16>, vector<1x256xf32> -> vector<1x256xf32>
    %c0_10 = arith.constant 0 : index
    %c0_11 = arith.constant 0 : index
    %15 = memref.load %arg6[%c0_10, %c0_11] : memref<1x1xf32, #tpu.memory_space<smem>>
    %16 = vector.broadcast %15 : f32 to vector<1x256xf32>
    %17 = arith.addf %14, %16 : vector<1x256xf32>
    %c0_12 = arith.constant 0 : index
    %c0_13 = arith.constant 0 : index
    %c0_14 = arith.constant 0 : index
    %18 = vector.load %arg7[%c0_12, %c0_13, %c0_14] : memref<1x1x256xf32, #tpu.memory_space<vmem>>, vector<1x1x256xf32>
    %19 = vector.shape_cast %18 : vector<1x1x256xf32> to vector<1x256xf32>
    %20 = vector.shape_cast %17 : vector<1x256xf32> to vector<1x1x256xf32>
    tpu.vector_store %arg7[%c0_12, %c0_13, %c0_14], %20 {strides = array<i32>} : memref<1x1x256xf32, #tpu.memory_space<vmem>>, vector<1x1x256xf32>,
    return
  }
  func.func @transform_0(%arg0: i32, %arg1: i32) -> (i32, i32, i32) {
    %c0_i32 = arith.constant 0 : i32
    %c0_i32_0 = arith.constant 0 : i32
    return %arg0, %c0_i32, %arg1 : i32, i32, i32
  }
  func.func @transform_1(%arg0: i32, %arg1: i32) -> (i32, i32) {
    %c0_i32 = arith.constant 0 : i32
    %c0_i32_0 = arith.constant 0 : i32
    %c0_i32_1 = arith.constant 0 : i32
    return %c0_i32, %c0_i32_0 : i32, i32
  }
  func.func @transform_2(%arg0: i32, %arg1: i32) -> (i32, i32) {
    %c0_i32 = arith.constant 0 : i32
    %c0_i32_0 = arith.constant 0 : i32
    %c0_i32_1 = arith.constant 0 : i32
    return %c0_i32, %c0_i32_0 : i32, i32
  }
  func.func @transform_3(%arg0: i32, %arg1: i32) -> (i32, i32) {
    %c0_i32 = arith.constant 0 : i32
    %c0_i32_0 = arith.constant 0 : i32
    %c0_i32_1 = arith.constant 0 : i32
    return %c0_i32, %c0_i32_0 : i32, i32
  }
  func.func @transform_4(%arg0: i32, %arg1: i32) -> (i32, i32) {
    %c0_i32 = arith.constant 0 : i32
    %c0_i32_0 = arith.constant 0 : i32
    %c0_i32_1 = arith.constant 0 : i32
    return %c0_i32, %c0_i32_0 : i32, i32
  }
  func.func @transform_5(%arg0: i32, %arg1: i32) -> (i32, i32, i32) {
    %c0_i32 = arith.constant 0 : i32
    %c0_i32_0 = arith.constant 0 : i32
    return %arg0, %c0_i32, %arg1 : i32, i32, i32
  }
}

</mosaic_0001>

<llo_original>
// kernel: tpu_custom_call.1
$region0: #{tpu_custom_call.1}
  #allocation0 [shape = 'u32[]', space=smem, size = 0x4, offset = 0x4, fixed_abs, tag = 'smem constant byte address 0x4 - core index']
  #allocation1 [shape = 'u32[72,128]{1,0:T(1,128)}', space=vmem, size = 0x9000, scoped, tag = 'internal scratch']
  #allocation2 [shape = 'f32[1,1]{1,0:T(1,128)S(6)}', space=smem, size = 0x200, scoped, tag = 'scoped memory for tpu_custom_call.1']
  %s0 = inlined_call_operand.vmem [shape: f32[2,4,520], index: 0, kind: input, shape index: {}]
  %s1 = inlined_call_operand.vmem [shape: f32[128,4], index: 1, kind: input, shape index: {}]
  %s2 = inlined_call_operand.vmem [shape: f32[128,1], index: 2, kind: input, shape index: {}]
  %s3 = inlined_call_operand.vmem [shape: f32[1,128], index: 3, kind: input, shape index: {}]
  %s4 = inlined_call_operand.<no memory space> [shape: f32[1,1], index: 4, kind: input, shape index: {}]
  %s5 = inlined_call_operand.hbm [shape: f32[2,1,520], index: 5, kind: output, shape index: {}]
  %s6 = sld [smem:[#allocation0]]
  $region53: #{tpu_custom_call.1} parent=0
    _
  %s8 = ssub.s32 1, %s6
  %s9 = scalar_select 0, %s8, %s6
  %10 = sst [smem:[#allocation2]] %s4
  $region1: #{tpu_custom_call.1} parent=0
    #allocation3 [shape = 'u8[2048]{0}', space=vmem, size = 0x800, scoped, tag = 'output window, operand 0']
    #allocation4 [shape = 's32[2]{0}', space=sflag, size = 0x8, scoped, tag = 'scoped memory for tpu_custom_call.1']
    %11 = vsyncpa [#allocation4], 0
    %s12 = scalar_lea.sflag [#allocation4], 1
    %13 = vsyncpa %s12, 0
    loop: start=0, step=1, limit=8
    $region2: #{tpu_custom_call.1} parent=1 // loop_pre_header
      _
    $region3: #{tpu_custom_call.1} parent=1 // loop_header
      %s15 = sphi 0, %s19
      %p16 = scmp.ge.s32.totalorder %s15, 8
      %s22 = sphi 0, %s34
      %s23 = sphi 0, %s30
      %s24 = sphi 0, %s22
      %s25 = sphi 0, %s23
      %s26 = sphi 0, %s24
      %s27 = sphi 0, %s25
      %s39 = sphi 0, %s41
      %s42 = sphi 0, %s39
      %s43 = sphi 0, %s42
      %s59 = sphi 0, %s43
      %s63 = sphi 0, %s63
      %s65 = sphi 0, %s63
      %s66 = sphi 0, %s65
      %s80 = sphi 0, %s66
      %s84 = sphi 0, %s84
      %s86 = sphi 0, %s84
      %s87 = sphi 0, %s86
      %s101 = sphi 0, %s87
      %s105 = sphi 0, %s105
      %s107 = sphi 0, %s105
      %s108 = sphi 0, %s107
      %s122 = sphi 0, %s108
      %s126 = sphi 0, %s126
      %s128 = sphi 0, %s126
      %s129 = sphi 0, %s128
      %s143 = sphi 0, %s129
      %s151 = sphi 0, %s153
      %s154 = sphi 0, %s151
      %s155 = sphi 0, %s154
      %s171 = sphi 0, %s155
    $region4: #{tpu_custom_call.1} parent=1 // loop_header_branch
      %18 = sbr.rel (%p16) target = $region8
    $region5: #{tpu_custom_call.1} parent=1 // loop_body
      %s20 = ssub.s32 %s15, 1
      %s21 = ssub.s32 %s15, 2
      %s28 = sadd.s32 1, %s23
      %p29 = scmp.ge.s32.totalorder %s28, 3
      %s30 = scalar_select %p29, 0, %s28
      %s31 = sadd.s32 1, %s22
      %s32 = scalar_select %p29, %s31, %s22
      %p33 = scmp.ge.s32.totalorder %s32, 2
      %s34 = scalar_select %p33, 0, %s32
      %s35 = ssub.s32 %s22, %s34
      %s36 = ssub.s32 %s23, %s30
      %s37 = sor.u32 %s35, %s36
      %p38 = scmp.eq.s32.totalorder %s37, 0
      %s40 = sadd.s32 %s39, 1
      %s41 = scalar_select %p38, %s39, %s40
      %p44 = pneg %p38
      %p45 = scmp.eq.s32.totalorder %s15, 5
      %p46 = por %p44, %p45
      %p47 = scmp.ne.s32.totalorder %s39, %s42
      %p48 = scmp.eq.s32.totalorder %s15, 0
      %p49 = por %p47, %p48
      %p50 = scmp.ne.s32.totalorder %s39, %s42
      %p51 = scmp.eq.s32.totalorder %s20, 5
      %p52 = por %p50, %p51
      %p53 = scmp.ne.s32.totalorder %s42, %s43
      %p54 = scmp.eq.s32.totalorder %s20, 0
      %p55 = por %p53, %p54
      %p56 = scmp.ne.s32.totalorder %s42, %s43
      %p57 = scmp.eq.s32.totalorder %s21, 5
      %p58 = por %p56, %p57
      %p60 = scmp.ne.s32.totalorder %s43, %s59
      %p61 = scmp.eq.s32.totalorder %s21, 0
      %p62 = por %p60, %p61
      %s64 = sadd.s32 %s63, 1
      %p67 = scmp.eq.s32.totalorder %s15, 5
      %p68 = scmp.ne.s32.totalorder %s63, %s65
      %p69 = scmp.eq.s32.totalorder %s15, 0
      %p70 = por %p68, %p69
      %p71 = scmp.ne.s32.totalorder %s63, %s65
      %p72 = scmp.eq.s32.totalorder %s20, 5
      %p73 = por %p71, %p72
      %p74 = scmp.ne.s32.totalorder %s65, %s66
      %p75 = scmp.eq.s32.totalorder %s20, 0
      %p76 = por %p74, %p75
      %p77 = scmp.ne.s32.totalorder %s65, %s66
      %p78 = scmp.eq.s32.totalorder %s21, 5
      %p79 = por %p77, %p78
      %p81 = scmp.ne.s32.totalorder %s66, %s80
      %p82 = scmp.eq.s32.totalorder %s21, 0
      %p83 = por %p81, %p82
      %s85 = sadd.s32 %s84, 1
      %p88 = scmp.eq.s32.totalorder %s15, 5
      %p89 = scmp.ne.s32.totalorder %s84, %s86
      %p90 = scmp.eq.s32.totalorder %s15, 0
      %p91 = por %p89, %p90
      %p92 = scmp.ne.s32.totalorder %s84, %s86
      %p93 = scmp.eq.s32.totalorder %s20, 5
      %p94 = por %p92, %p93
      %p95 = scmp.ne.s32.totalorder %s86, %s87
      %p96 = scmp.eq.s32.totalorder %s20, 0
      %p97 = por %p95, %p96
      %p98 = scmp.ne.s32.totalorder %s86, %s87
      %p99 = scmp.eq.s32.totalorder %s21, 5
      %p100 = por %p98, %p99
      %p102 = scmp.ne.s32.totalorder %s87, %s101
      %p103 = scmp.eq.s32.totalorder %s21, 0
      %p104 = por %p102, %p103
      %s106 = sadd.s32 %s105, 1
      %p109 = scmp.eq.s32.totalorder %s15, 5
      %p110 = scmp.ne.s32.totalorder %s105, %s107
      %p111 = scmp.eq.s32.totalorder %s15, 0
      %p112 = por %p110, %p111
      %p113 = scmp.ne.s32.totalorder %s105, %s107
      %p114 = scmp.eq.s32.totalorder %s20, 5
      %p115 = por %p113, %p114
      %p116 = scmp.ne.s32.totalorder %s107, %s108
      %p117 = scmp.eq.s32.totalorder %s20, 0
      %p118 = por %p116, %p117
      %p119 = scmp.ne.s32.totalorder %s107, %s108
      %p120 = scmp.eq.s32.totalorder %s21, 5
      %p121 = por %p119, %p120
      %p123 = scmp.ne.s32.totalorder %s108, %s122
      %p124 = scmp.eq.s32.totalorder %s21, 0
      %p125 = por %p123, %p124
      %s127 = sadd.s32 %s126, 1
      %p130 = scmp.eq.s32.totalorder %s15, 5
      %p131 = scmp.ne.s32.totalorder %s126, %s128
      %p132 = scmp.eq.s32.totalorder %s15, 0
      %p133 = por %p131, %p132
      %p134 = scmp.ne.s32.totalorder %s126, %s128
      %p135 = scmp.eq.s32.totalorder %s20, 5
      %p136 = por %p134, %p135
      %p137 = scmp.ne.s32.totalorder %s128, %s129
      %p138 = scmp.eq.s32.totalorder %s20, 0
      %p139 = por %p137, %p138
      %p140 = scmp.ne.s32.totalorder %s128, %s129
      %p141 = scmp.eq.s32.totalorder %s21, 5
      %p142 = por %p140, %p141
      %p144 = scmp.ne.s32.totalorder %s129, %s143
      %p145 = scmp.eq.s32.totalorder %s21, 0
      %p146 = por %p144, %p145
      %s147 = ssub.s32 %s22, %s34
      %s148 = ssub.s32 %s23, %s30
      %s149 = sor.u32 %s147, %s148
      %p150 = scmp.eq.s32.totalorder %s149, 0
      %s152 = sadd.s32 %s151, 1
      %s153 = scalar_select %p150, %s151, %s152
      %p156 = pneg %p150
      %p157 = scmp.eq.s32.totalorder %s15, 5
      %p158 = por %p156, %p157
      %p159 = scmp.ne.s32.totalorder %s151, %s154
      %p160 = scmp.eq.s32.totalorder %s15, 0
      %p161 = por %p159, %p160
      %p162 = scmp.ne.s32.totalorder %s151, %s154
      %p163 = scmp.eq.s32.totalorder %s20, 5
      %p164 = por %p162, %p163
      %p165 = scmp.ne.s32.totalorder %s154, %s155
      %p166 = scmp.eq.s32.totalorder %s20, 0
      %p167 = por %p165, %p166
      %p168 = scmp.ne.s32.totalorder %s154, %s155
      %p169 = scmp.eq.s32.totalorder %s21, 5
      %p170 = por %p168, %p169
      %p172 = scmp.ne.s32.totalorder %s155, %s171
      %p173 = scmp.eq.s32.totalorder %s21, 0
      %p174 = por %p172, %p173
      %p175 = scmp.le.s32.totalorder 1, %s15
      %p176 = scmp.lt.s32.totalorder %s15, 7
      %p177 = pnand %p175, %p176
      %p178 = pneg %p177
      // Predicated region
      $region9: #{tpu_custom_call.1} parent=5 // pred_check
        _
      $region10: #{tpu_custom_call.1} parent=5 // pred_check_branch
        %180 = sbr.rel (%p177) target = $region12
      $region11: #{tpu_custom_call.1} parent=5 // pred_region
        %s181 = ssub.s32 %s15, 1
        // Predicated region
        $region13: #{tpu_custom_call.1} parent=11 // pred_check
          %p182 = pneg %p76
        $region14: #{tpu_custom_call.1} parent=11 // pred_check_branch
          %184 = sbr.rel (%p182) target = $region16
        $region15: #{tpu_custom_call.1} parent=11 // pred_region
          _
        $region16: #{tpu_custom_call.1} parent=11 // pred_fallthru
          _
        // Predicated region
        $region17: #{tpu_custom_call.1} parent=11 // pred_check
          %p185 = pneg %p97
        $region18: #{tpu_custom_call.1} parent=11 // pred_check_branch
          %187 = sbr.rel (%p185) target = $region20
        $region19: #{tpu_custom_call.1} parent=11 // pred_region
          _
        $region20: #{tpu_custom_call.1} parent=11 // pred_fallthru
          _
        // Predicated region
        $region21: #{tpu_custom_call.1} parent=11 // pred_check
          %p188 = pneg %p118
        $region22: #{tpu_custom_call.1} parent=11 // pred_check_branch
          %190 = sbr.rel (%p188) target = $region24
        $region23: #{tpu_custom_call.1} parent=11 // pred_region
          _
        $region24: #{tpu_custom_call.1} parent=11 // pred_fallthru
          _
        // Predicated region
        $region25: #{tpu_custom_call.1} parent=11 // pred_check
          %p191 = pneg %p139
        $region26: #{tpu_custom_call.1} parent=11 // pred_check_branch
          %193 = sbr.rel (%p191) target = $region28
        $region27: #{tpu_custom_call.1} parent=11 // pred_region
          _
        $region28: #{tpu_custom_call.1} parent=11 // pred_fallthru
          _
      $region12: #{tpu_custom_call.1} parent=5 // pred_fallthru
        _
      %p194 = scmp.lt.s32.totalorder %s15, 6
      // Predicated region
      $region29: #{tpu_custom_call.1} parent=5 // pred_check
        %p195 = pneg %p194
      $region30: #{tpu_custom_call.1} parent=5 // pred_check_branch
        %197 = sbr.rel (%p195) target = $region32
      $region31: #{tpu_custom_call.1} parent=5 // pred_region
        // Predicated region
        $region33: #{tpu_custom_call.1} parent=31 // pred_check
          %p198 = pneg %p49
        $region34: #{tpu_custom_call.1} parent=31 // pred_check_branch
          %200 = sbr.rel (%p198) target = $region36
        $region35: #{tpu_custom_call.1} parent=31 // pred_region
          %s201 = smul.u32 2, %s23
          %s202 = ssub.s32 5, %s201
          %p203 = scmp.lt.s32.totalorder %s202, 2
          %s204 = scalar_select %p203, %s202, 2
          %s205 = smul.u32 4, %s204
          %p206 = scmp.lt.s32.totalorder %s22, 1
          %s207 = scalar_select %p206, %s22, 1
          %p208 = scmp.lt.s32.totalorder %s201, 4
          %s209 = scalar_select %p208, %s201, 4
          %s210 = smul.addr %s207, 5
          %s211 = sadd.s32 %s209, %s210
          %s212 = smul.addr %s211, 4
          %s213 = scalar_lea.vmem %s0, %s212
          %s214 = smul.u32 2, %s23
          %s215 = ssub.s32 5, %s214
          %p216 = scmp.lt.s32.totalorder %s215, 2
          %s217 = scalar_select %p216, %s215, 2
          %s218 = smul.u32 4, %s217
        $region36: #{tpu_custom_call.1} parent=31 // pred_fallthru
          _
      $region32: #{tpu_custom_call.1} parent=5 // pred_fallthru
        _
      %p219 = scmp.le.s32.totalorder 1, %s15
      %p220 = scmp.lt.s32.totalorder %s15, 7
      %p221 = pnand %p219, %p220
      %p222 = pneg %p221
      // Predicated region
      $region37: #{tpu_custom_call.1} parent=5 // pred_check
        _
      $region38: #{tpu_custom_call.1} parent=5 // pred_check_branch
        %224 = sbr.rel (%p221) target = $region40
      $region39: #{tpu_custom_call.1} parent=5 // pred_region
        %s225 = ssub.s32 %s15, 1
        %s226 = smul.u32 2, %s25
        %s227 = ssub.s32 5, %s226
        %p228 = scmp.lt.s32.totalorder %s227, 2
        %s229 = scalar_select %p228, %s227, 2
        %s230 = smul.u32 4, %s229
        %p231 = scmp.lt.s32.totalorder %s24, 1
        %s232 = scalar_select %p231, %s24, 1
        %p233 = scmp.lt.s32.totalorder %s226, 4
        %s234 = scalar_select %p233, %s226, 4
        %s235 = smul.addr %s232, 5
        %s236 = sadd.s32 %s234, %s235
        %s237 = smul.addr %s236, 4
        %s238 = scalar_lea.vmem %s0, %s237
        %p239 = pneg %p55
        %p240 = pneg %p52
        %p241 = pneg %p76
        %p242 = pneg %p73
        %p243 = pneg %p97
        %p244 = pneg %p94
        %p245 = pneg %p118
        %p246 = pneg %p115
        %p247 = pneg %p139
        %p248 = pneg %p136
        %p249 = pneg %p167
        %p250 = pneg %p164
        %s251 = sand.u32 %s154, 1
        %s252 = scalar_lea.sflag [#allocation4], %s251
        %s253 = sand.u32 %s154, 1
        %s254 = smul.addr %s253, 2
        %s255 = scalar_lea.vmem [#allocation3], %s254
        %s256 = smul.u32 2, %s25
        %s257 = ssub.s32 5, %s256
        %p258 = scmp.lt.s32.totalorder %s257, 2
        %s259 = scalar_select %p258, %s257, 2
        %s260 = smul.u32 4, %s259
        %p261 = scmp.lt.s32.totalorder %s24, 1
        %s262 = scalar_select %p261, %s24, 1
        %p263 = scmp.lt.s32.totalorder %s256, 4
        %s264 = scalar_select %p263, %s256, 4
        %s265 = smul.addr %s262, 5
        %s266 = sadd.s32 %s264, %s265
        %s267 = smul.addr %s266, 4
        %s268 = scalar_lea.vmem %s0, %s267
        %s269 = smul.u32 2, %s25
        %s270 = ssub.s32 5, %s269
        %p271 = scmp.lt.s32.totalorder %s270, 2
        %s272 = scalar_select %p271, %s270, 2
        %s273 = smul.u32 4, %s272
        %s274 = smul.u32 2, %s25
        %s275 = ssub.s32 5, %s274
        %p276 = scmp.lt.s32.totalorder %s275, 2
        %s277 = scalar_select %p276, %s275, 2
        %v279 = vld [vmem:[%s268] sm:$0xff]
        %v280 = vld [vmem:[%s1] sm:$0xff]
        %v281 = vld [vmem:[%s1 + $0x8] sm:$0xff]
        %v282 = vld [vmem:[%s1 + $0x10] sm:$0xff]
        %v283 = vld [vmem:[%s1 + $0x18] sm:$0xff]
        %v284 = vld [vmem:[%s1 + $0x20] sm:$0xff]
        %v285 = vld [vmem:[%s1 + $0x28] sm:$0xff]
        %v286 = vld [vmem:[%s1 + $0x30] sm:$0xff]
        %v287 = vld [vmem:[%s1 + $0x38] sm:$0xff]
        %v288 = vld [vmem:[%s1 + $0x40] sm:$0xff]
        %v289 = vld [vmem:[%s1 + $0x48] sm:$0xff]
        %v290 = vld [vmem:[%s1 + $0x50] sm:$0xff]
        %v291 = vld [vmem:[%s1 + $0x58] sm:$0xff]
        %v292 = vld [vmem:[%s1 + $0x60] sm:$0xff]
        %v293 = vld [vmem:[%s1 + $0x68] sm:$0xff]
        %v294 = vld [vmem:[%s1 + $0x70] sm:$0xff]
        %v295 = vld [vmem:[%s1 + $0x78] sm:$0xff]
        %297 = vst [vmem:[#allocation1] ss:$2 sm:$0xff] %v279
        %v298 = vld.sshfl [vmem:[#allocation1] sm:$0xff pattern:$0x75316420]
        %v299 = vld.sshfl [vmem:[#allocation1 + $0x8] sm:$0xff pattern:$0x75316420]
        %v302 = vpack.c.bf16 %v298, %v298
        %v303 = vpack.c.bf16 %v299, %v299
        %v304 = vpack.c.bf16 %v281, %v280
        %v305 = vpack.c.bf16 %v283, %v282
        %v306 = vpack.c.bf16 %v285, %v284
        %v307 = vpack.c.bf16 %v287, %v286
        %v308 = vpack.c.bf16 %v289, %v288
        %v309 = vpack.c.bf16 %v291, %v290
        %v310 = vpack.c.bf16 %v293, %v292
        %v311 = vpack.c.bf16 %v295, %v294
        %v312 = vld [vmem:[%s2] sm:$0xff]
        %v313 = vld [vmem:[%s2 + $0x8] sm:$0xff]
        %v314 = vld [vmem:[%s2 + $0x10] sm:$0xff]
        %v315 = vld [vmem:[%s2 + $0x18] sm:$0xff]
        %v316 = vld [vmem:[%s2 + $0x20] sm:$0xff]
        %v317 = vld [vmem:[%s2 + $0x28] sm:$0xff]
        %v318 = vld [vmem:[%s2 + $0x30] sm:$0xff]
        %v319 = vld [vmem:[%s2 + $0x38] sm:$0xff]
        %v320 = vld [vmem:[%s2 + $0x40] sm:$0xff]
        %v321 = vld [vmem:[%s2 + $0x48] sm:$0xff]
        %v322 = vld [vmem:[%s2 + $0x50] sm:$0xff]
        %v323 = vld [vmem:[%s2 + $0x58] sm:$0xff]
        %v324 = vld [vmem:[%s2 + $0x60] sm:$0xff]
        %v325 = vld [vmem:[%s2 + $0x68] sm:$0xff]
        %v326 = vld [vmem:[%s2 + $0x70] sm:$0xff]
        %v327 = vld [vmem:[%s2 + $0x78] sm:$0xff]
        %329 = vset.pattern.permute.xlu0 0
        %330 = vperm.xlu0 %329, %v312
        %v331 = vpop.permute.xlu0 %330
        %334 = vset.pattern.permute.xlu0 0
        %335 = vperm.xlu0 %334, %v313
        %v336 = vpop.permute.xlu0 %335
        %339 = vset.pattern.permute.xlu0 0
        %340 = vperm.xlu0 %339, %v314
        %v341 = vpop.permute.xlu0 %340
        %344 = vset.pattern.permute.xlu0 0
        %345 = vperm.xlu0 %344, %v315
        %v346 = vpop.permute.xlu0 %345
        %349 = vset.pattern.permute.xlu0 0
        %350 = vperm.xlu0 %349, %v316
        %v351 = vpop.permute.xlu0 %350
        %354 = vset.pattern.permute.xlu0 0
        %355 = vperm.xlu0 %354, %v317
        %v356 = vpop.permute.xlu0 %355
        %359 = vset.pattern.permute.xlu0 0
        %360 = vperm.xlu0 %359, %v318
        %v361 = vpop.permute.xlu0 %360
        %364 = vset.pattern.permute.xlu0 0
        %365 = vperm.xlu0 %364, %v319
        %v366 = vpop.permute.xlu0 %365
        %369 = vset.pattern.permute.xlu0 0
        %370 = vperm.xlu0 %369, %v320
        %v371 = vpop.permute.xlu0 %370
        %374 = vset.pattern.permute.xlu0 0
        %375 = vperm.xlu0 %374, %v321
        %v376 = vpop.permute.xlu0 %375
        %379 = vset.pattern.permute.xlu0 0
        %380 = vperm.xlu0 %379, %v322
        %v381 = vpop.permute.xlu0 %380
        %384 = vset.pattern.permute.xlu0 0
        %385 = vperm.xlu0 %384, %v323
        %v386 = vpop.permute.xlu0 %385
        %389 = vset.pattern.permute.xlu0 0
        %390 = vperm.xlu0 %389, %v324
        %v391 = vpop.permute.xlu0 %390
        %394 = vset.pattern.permute.xlu0 0
        %395 = vperm.xlu0 %394, %v325
        %v396 = vpop.permute.xlu0 %395
        %399 = vset.pattern.permute.xlu0 0
        %400 = vperm.xlu0 %399, %v326
        %v401 = vpop.permute.xlu0 %400
        %404 = vset.pattern.permute.xlu0 0
        %405 = vperm.xlu0 %404, %v327
        %v406 = vpop.permute.xlu0 %405
        %vm408 = vcmask 31744
        %v410 = vsel %vm408, %v304, 0
        %v413 = vsel %vm408, %v305, 0
        %v416 = vsel %vm408, %v306, 0
        %v419 = vsel %vm408, %v307, 0
        %v422 = vsel %vm408, %v308, 0
        %v425 = vsel %vm408, %v309, 0
        %v428 = vsel %vm408, %v310, 0
        %v431 = vsel %vm408, %v311, 0
        %vm433 = vcmask 1041408
        %v435 = vsel %vm433, %v302, 0
        %v438 = vsel %vm433, %v303, 0
        %440 = vmatpush.bf16.msra.mxu0 0
        %441 = vmatpush.bf16.msra.mxu0 0
        %442 = vmatpush.bf16.msra.mxu0 0
        %443 = vmatpush.bf16.msra.mxu0 0
        %444 = vmatpush.bf16.msra.mxu0 0
        %445 = vmatpush.bf16.msra.mxu0 0
        %446 = vmatpush.bf16.msra.mxu0 0
        %447 = vmatpush.bf16.msra.mxu0 %v435
        %448 = vmatmul.bf16.gmra.mxu0 %v410
        %v449 = vpop.f32.mrf.mxu0
        %v450 = vadd.f32 %v331, %v449
        %v451 = vpop.f32.mrf.mxu0
        %v452 = vadd.f32 %v336, %v451
        %453 = vmatmul.bf16.gmra.mxu0 %v413
        %v454 = vpop.f32.mrf.mxu0
        %v455 = vadd.f32 %v341, %v454
        %v456 = vpop.f32.mrf.mxu0
        %v457 = vadd.f32 %v346, %v456
        %458 = vmatmul.bf16.gmra.mxu0 %v416
        %v459 = vpop.f32.mrf.mxu0
        %v460 = vadd.f32 %v351, %v459
        %v461 = vpop.f32.mrf.mxu0
        %v462 = vadd.f32 %v356, %v461
        %463 = vmatmul.bf16.gmra.mxu0 %v419
        %v464 = vpop.f32.mrf.mxu0
        %v465 = vadd.f32 %v361, %v464
        %v466 = vpop.f32.mrf.mxu0
        %v467 = vadd.f32 %v366, %v466
        %468 = vmatmul.bf16.gmra.mxu0 %v422
        %v469 = vpop.f32.mrf.mxu0
        %v470 = vadd.f32 %v371, %v469
        %v471 = vpop.f32.mrf.mxu0
        %v472 = vadd.f32 %v376, %v471
        %473 = vmatmul.bf16.gmra.mxu0 %v425
        %v474 = vpop.f32.mrf.mxu0
        %v475 = vadd.f32 %v381, %v474
        %v476 = vpop.f32.mrf.mxu0
        %v477 = vadd.f32 %v386, %v476
        %478 = vmatmul.bf16.gmra.mxu0 %v428
        %v479 = vpop.f32.mrf.mxu0
        %v480 = vadd.f32 %v391, %v479
        %v481 = vpop.f32.mrf.mxu0
        %v482 = vadd.f32 %v396, %v481
        %483 = vmatmul.bf16.gmra.mxu0 %v431
        %v484 = vpop.f32.mrf.mxu0
        %v485 = vadd.f32 %v401, %v484
        %v486 = vpop.f32.mrf.mxu0
        %v487 = vadd.f32 %v406, %v486
        %488 = vdwg.mxu0
        %489 = vmatpush.bf16.msra.mxu0 0
        %490 = vmatpush.bf16.msra.mxu0 0
        %491 = vmatpush.bf16.msra.mxu0 0
        %492 = vmatpush.bf16.msra.mxu0 0
        %493 = vmatpush.bf16.msra.mxu0 0
        %494 = vmatpush.bf16.msra.mxu0 0
        %495 = vmatpush.bf16.msra.mxu0 0
        %496 = vmatpush.bf16.msra.mxu0 %v438
        %497 = vmatmul.bf16.gmra.mxu0 %v410
        %v498 = vpop.f32.mrf.mxu0
        %v499 = vadd.f32 %v331, %v498
        %v500 = vpop.f32.mrf.mxu0
        %v501 = vadd.f32 %v336, %v500
        %502 = vmatmul.bf16.gmra.mxu0 %v413
        %v503 = vpop.f32.mrf.mxu0
        %v504 = vadd.f32 %v341, %v503
        %v505 = vpop.f32.mrf.mxu0
        %v506 = vadd.f32 %v346, %v505
        %507 = vmatmul.bf16.gmra.mxu0 %v416
        %v508 = vpop.f32.mrf.mxu0
        %v509 = vadd.f32 %v351, %v508
        %v510 = vpop.f32.mrf.mxu0
        %v511 = vadd.f32 %v356, %v510
        %512 = vmatmul.bf16.gmra.mxu0 %v419
        %v513 = vpop.f32.mrf.mxu0
        %v514 = vadd.f32 %v361, %v513
        %v515 = vpop.f32.mrf.mxu0
        %v516 = vadd.f32 %v366, %v515
        %517 = vmatmul.bf16.gmra.mxu0 %v422
        %v518 = vpop.f32.mrf.mxu0
        %v519 = vadd.f32 %v371, %v518
        %v520 = vpop.f32.mrf.mxu0
        %v521 = vadd.f32 %v376, %v520
        %522 = vmatmul.bf16.gmra.mxu0 %v425
        %v523 = vpop.f32.mrf.mxu0
        %v524 = vadd.f32 %v381, %v523
        %v525 = vpop.f32.mrf.mxu0
        %v526 = vadd.f32 %v386, %v525
        %527 = vmatmul.bf16.gmra.mxu0 %v428
        %v528 = vpop.f32.mrf.mxu0
        %v529 = vadd.f32 %v391, %v528
        %v530 = vpop.f32.mrf.mxu0
        %v531 = vadd.f32 %v396, %v530
        %532 = vmatmul.bf16.gmra.mxu0 %v431
        %v533 = vpop.f32.mrf.mxu0
        %v534 = vadd.f32 %v401, %v533
        %v535 = vpop.f32.mrf.mxu0
        %v536 = vadd.f32 %v406, %v535
        %537 = vdwg.mxu0
        %v538 = vmax.f32 %v450, 0.0
        %v539 = vmax.f32 %v499, 0.0
        %v540 = vmax.f32 %v452, 0.0
        %v541 = vmax.f32 %v501, 0.0
        %v542 = vmax.f32 %v455, 0.0
        %v543 = vmax.f32 %v504, 0.0
        %v544 = vmax.f32 %v457, 0.0
        %v545 = vmax.f32 %v506, 0.0
        %v546 = vmax.f32 %v460, 0.0
        %v547 = vmax.f32 %v509, 0.0
        %v548 = vmax.f32 %v462, 0.0
        %v549 = vmax.f32 %v511, 0.0
        %v550 = vmax.f32 %v465, 0.0
        %v551 = vmax.f32 %v514, 0.0
        %v552 = vmax.f32 %v467, 0.0
        %v553 = vmax.f32 %v516, 0.0
        %v554 = vmax.f32 %v470, 0.0
        %v555 = vmax.f32 %v519, 0.0
        %v556 = vmax.f32 %v472, 0.0
        %v557 = vmax.f32 %v521, 0.0
        %v558 = vmax.f32 %v475, 0.0
        %v559 = vmax.f32 %v524, 0.0
        %v560 = vmax.f32 %v477, 0.0
        %v561 = vmax.f32 %v526, 0.0
        %v562 = vmax.f32 %v480, 0.0
        %v563 = vmax.f32 %v529, 0.0
        %v564 = vmax.f32 %v482, 0.0
        %v565 = vmax.f32 %v531, 0.0
        %v566 = vmax.f32 %v485, 0.0
        %v567 = vmax.f32 %v534, 0.0
        %v568 = vmax.f32 %v487, 0.0
        %v569 = vmax.f32 %v536, 0.0
        %v570 = vpack.c.bf16 %v540, %v538
        %v571 = vpack.c.bf16 %v541, %v539
        %v572 = vpack.c.bf16 %v544, %v542
        %v573 = vpack.c.bf16 %v545, %v543
        %v574 = vpack.c.bf16 %v548, %v546
        %v575 = vpack.c.bf16 %v549, %v547
        %v576 = vpack.c.bf16 %v552, %v550
        %v577 = vpack.c.bf16 %v553, %v551
        %v578 = vpack.c.bf16 %v556, %v554
        %v579 = vpack.c.bf16 %v557, %v555
        %v580 = vpack.c.bf16 %v560, %v558
        %v581 = vpack.c.bf16 %v561, %v559
        %v582 = vpack.c.bf16 %v564, %v562
        %v583 = vpack.c.bf16 %v565, %v563
        %v584 = vpack.c.bf16 %v568, %v566
        %v585 = vpack.c.bf16 %v569, %v567
        %v586 = vld [vmem:[%s3] sm:$0x1]
        %v587 = vpack.c.bf16 %v586, %v586
        %s588 = sld [smem:[#allocation2]]
        %v589 = vstv %s588
        %590 = vmatpush.bf16.msra.mxu0 %v584
        %591 = vmatpush.bf16.msra.mxu0 %v582
        %592 = vmatpush.bf16.msra.mxu0 %v580
        %593 = vmatpush.bf16.msra.mxu0 %v578
        %594 = vmatpush.bf16.msra.mxu0 %v576
        %595 = vmatpush.bf16.msra.mxu0 %v574
        %596 = vmatpush.bf16.msra.mxu0 %v572
        %597 = vmatpush.bf16.msra.mxu0 %v570
        %598 = vmatmul.bf16.gmra.mxu0 %v587
        %v599 = vpop.f32.mrf.mxu0
        %v600 = vadd.f32 %v589, %v599
        %v601 = vpop.f32.mrf.mxu0
        %602 = vdwg.mxu0
        %603 = vmatpush.bf16.msra.mxu0 %v585
        %604 = vmatpush.bf16.msra.mxu0 %v583
        %605 = vmatpush.bf16.msra.mxu0 %v581
        %606 = vmatpush.bf16.msra.mxu0 %v579
        %607 = vmatpush.bf16.msra.mxu0 %v577
        %608 = vmatpush.bf16.msra.mxu0 %v575
        %609 = vmatpush.bf16.msra.mxu0 %v573
        %610 = vmatpush.bf16.msra.mxu0 %v571
        %611 = vmatmul.bf16.gmra.mxu0 %v587
        %v612 = vpop.f32.mrf.mxu0
        %v613 = vadd.f32 %v589, %v612
        %v614 = vpop.f32.mrf.mxu0
        %615 = vdwg.mxu0
        %v618 = vrot.slane %v613, 7
        %vm619 = vcmask 1040384
        %v620 = vsel %vm619, %v600, %v618
        %v622 = vlaneseq
        %vm623 = vcmp.ge.s32.totalorder %v622, 0
        %vm624 = vcmp.lt.s32.totalorder %v622, 256
        %vm625 = vmand %vm623, %vm624
        %626 = vst.msk [vmem:[%s255] sm:$0x3] %vm625, %v620
        %s627 = sand.u32 %s154, 1
        %s628 = scalar_lea.sflag [#allocation4], %s627
        %s629 = sand.u32 %s154, 1
        %s630 = smul.addr %s629, 2
        %s631 = scalar_lea.vmem [#allocation3], %s630
        // Predicated region
        $region41: #{tpu_custom_call.1} parent=39 // pred_check
          %p632 = pneg %p164
        $region42: #{tpu_custom_call.1} parent=39 // pred_check_branch
          %634 = sbr.rel (%p632) target = $region44
        $region43: #{tpu_custom_call.1} parent=39 // pred_region
          %s635 = smul.u32 2, %s25
          %s636 = ssub.s32 5, %s635
          %p637 = scmp.lt.s32.totalorder %s636, 2
          %s638 = scalar_select %p637, %s636, 2
          %s639 = ssub.s32 2, %s638
          %s640 = sshll.u32 %s639, 4
          %641 = vsyncadd %s628, %s640
          %p642 = scmp.ne.s32.totalorder 0, %s638
          %s643 = smul.addr %s24, 5
          %s644 = sadd.s32 %s635, %s643
          %s645 = scalar_lea.hbm %s5, %s644
          %s646 = sshll.u32 %s638, 4
          %s647 = sshll.u32 %s631, 4
          %s648 = int_to_ptr.vmem [resolvable:$true] %s647
          %s649 = sshll.u32 %s645, 4
          %s650 = int_to_ptr.hbm [resolvable:$true] %s649
          %652 = dma.vmem_to_hbm [thread:$0]  (%p642), %s648, %s646, %s650, %s628
        $region44: #{tpu_custom_call.1} parent=39 // pred_fallthru
          _
      $region40: #{tpu_custom_call.1} parent=5 // pred_fallthru
        _
      %p653 = scmp.le.s32.totalorder 2, %s15
      // Predicated region
      $region45: #{tpu_custom_call.1} parent=5 // pred_check
        %p654 = pneg %p653
      $region46: #{tpu_custom_call.1} parent=5 // pred_check_branch
        %656 = sbr.rel (%p654) target = $region48
      $region47: #{tpu_custom_call.1} parent=5 // pred_region
        %s657 = ssub.s32 %s15, 2
        // Predicated region
        $region49: #{tpu_custom_call.1} parent=47 // pred_check
          %p658 = pneg %p170
        $region50: #{tpu_custom_call.1} parent=47 // pred_check_branch
          %660 = sbr.rel (%p658) target = $region52
        $region51: #{tpu_custom_call.1} parent=47 // pred_region
          %s661 = sand.u32 %s155, 1
          %s662 = scalar_lea.sflag [#allocation4], %s661
          %s663 = sand.u32 %s155, 1
          %s664 = smul.addr %s663, 2
          %s665 = scalar_lea.vmem [#allocation3], %s664
          %667 = dma.done %s662, 32
        $region52: #{tpu_custom_call.1} parent=47 // pred_fallthru
          _
      $region48: #{tpu_custom_call.1} parent=5 // pred_fallthru
        _
    $region6: #{tpu_custom_call.1} parent=1 // loop_footer
      %s19 = sadd.s32 1, %s15
    $region7: #{tpu_custom_call.1} parent=1 // loop_footer_branch
      %14 = sbr.rel target = $region3
    $region8: #{tpu_custom_call.1} parent=1 // loop_exit
      _
    %668 = vsyncpa [#allocation4], 1
    %s669 = scalar_lea.sflag [#allocation4], 1
    %670 = vsyncpa %s669, 1

// kernel: tpu_custom_call.1
$region0: #{tpu_custom_call.1}
  #allocation0 [shape = 'u32[]', space=smem, size = 0x4, offset = 0x4, fixed_abs, tag = 'smem constant byte address 0x4 - core index']
  #allocation1 [shape = 'u32[72,128]{1,0:T(1,128)}', space=vmem, size = 0x9000, scoped, tag = 'internal scratch']
  #allocation2 [shape = 'f32[1,1]{1,0:T(1,128)S(6)}', space=smem, size = 0x200, scoped, tag = 'scoped memory for tpu_custom_call.1']
  %s0 = inlined_call_operand.vmem [shape: f32[2,4,520], index: 0, kind: input, shape index: {}]
  %s1 = inlined_call_operand.vmem [shape: f32[128,4], index: 1, kind: input, shape index: {}]
  %s2 = inlined_call_operand.vmem [shape: f32[128,1], index: 2, kind: input, shape index: {}]
  %s3 = inlined_call_operand.vmem [shape: f32[1,128], index: 3, kind: input, shape index: {}]
  %s4 = inlined_call_operand.<no memory space> [shape: f32[1,1], index: 4, kind: input, shape index: {}]
  %s5 = inlined_call_operand.hbm [shape: f32[2,1,520], index: 5, kind: output, shape index: {}]
  %s6 = sld [smem:[#allocation0]]
  $region53: #{tpu_custom_call.1} parent=0
    _
  %s8 = ssub.s32 1, %s6
  %s9 = scalar_select 0, %s8, %s6
  %10 = sst [smem:[#allocation2]] %s4
  $region1: #{tpu_custom_call.1} parent=0
    #allocation3 [shape = 'u8[2048]{0}', space=vmem, size = 0x800, scoped, tag = 'output window, operand 0']
    #allocation4 [shape = 's32[2]{0}', space=sflag, size = 0x8, scoped, tag = 'scoped memory for tpu_custom_call.1']
    %11 = vsyncpa [#allocation4], 0
    %s12 = scalar_lea.sflag [#allocation4], 1
    %13 = vsyncpa %s12, 0
    loop: start=0, step=1, limit=8
    $region2: #{tpu_custom_call.1} parent=1 // loop_pre_header
      _
    $region3: #{tpu_custom_call.1} parent=1 // loop_header
      %s15 = sphi 0, %s19
      %p16 = scmp.ge.s32.totalorder %s15, 8
      %s22 = sphi 0, %s34
      %s23 = sphi 0, %s30
      %s24 = sphi 0, %s22
      %s25 = sphi 0, %s23
      %s26 = sphi 0, %s24
      %s27 = sphi 0, %s25
      %s39 = sphi 0, %s41
      %s42 = sphi 0, %s39
      %s43 = sphi 0, %s42
      %s59 = sphi 0, %s43
      %s63 = sphi 0, %s63
      %s65 = sphi 0, %s63
      %s66 = sphi 0, %s65
      %s80 = sphi 0, %s66
      %s84 = sphi 0, %s84
      %s86 = sphi 0, %s84
      %s87 = sphi 0, %s86
      %s101 = sphi 0, %s87
      %s105 = sphi 0, %s105
      %s107 = sphi 0, %s105
      %s108 = sphi 0, %s107
      %s122 = sphi 0, %s108
      %s126 = sphi 0, %s126
      %s128 = sphi 0, %s126
      %s129 = sphi 0, %s128
      %s143 = sphi 0, %s129
      %s151 = sphi 0, %s153
      %s154 = sphi 0, %s151
      %s155 = sphi 0, %s154
      %s171 = sphi 0, %s155
    $region4: #{tpu_custom_call.1} parent=1 // loop_header_branch
      %18 = sbr.rel (%p16) target = $region8
    $region5: #{tpu_custom_call.1} parent=1 // loop_body
      %s20 = ssub.s32 %s15, 1
      %s21 = ssub.s32 %s15, 2
      %s28 = sadd.s32 1, %s23
      %p29 = scmp.ge.s32.totalorder %s28, 3
      %s30 = scalar_select %p29, 0, %s28
      %s31 = sadd.s32 1, %s22
      %s32 = scalar_select %p29, %s31, %s22
      %p33 = scmp.ge.s32.totalorder %s32, 2
      %s34 = scalar_select %p33, 0, %s32
      %s35 = ssub.s32 %s22, %s34
      %s36 = ssub.s32 %s23, %s30
      %s37 = sor.u32 %s35, %s36
      %p38 = scmp.eq.s32.totalorder %s37, 0
      %s40 = sadd.s32 %s39, 1
      %s41 = scalar_select %p38, %s39, %s40
      %p44 = pneg %p38
      %p45 = scmp.eq.s32.totalorder %s15, 5
      %p46 = por %p44, %p45
      %p47 = scmp.ne.s32.totalorder %s39, %s42
      %p48 = scmp.eq.s32.totalorder %s15, 0
      %p49 = por %p47, %p48
      %p50 = scmp.ne.s32.totalorder %s39, %s42
      %p51 = scmp.eq.s32.totalorder %s20, 5
      %p52 = por %p50, %p51
      %p53 = scmp.ne.s32.totalorder %s42, %s43
      %p54 = scmp.eq.s32.totalorder %s20, 0
      %p55 = por %p53, %p54
      %p56 = scmp.ne.s32.totalorder %s42, %s43
      %p57 = scmp.eq.s32.totalorder %s21, 5
      %p58 = por %p56, %p57
      %p60 = scmp.ne.s32.totalorder %s43, %s59
      %p61 = scmp.eq.s32.totalorder %s21, 0
      %p62 = por %p60, %p61
      %s64 = sadd.s32 %s63, 1
      %p67 = scmp.eq.s32.totalorder %s15, 5
      %p68 = scmp.ne.s32.totalorder %s63, %s65
      %p69 = scmp.eq.s32.totalorder %s15, 0
      %p70 = por %p68, %p69
      %p71 = scmp.ne.s32.totalorder %s63, %s65
      %p72 = scmp.eq.s32.totalorder %s20, 5
      %p73 = por %p71, %p72
      %p74 = scmp.ne.s32.totalorder %s65, %s66
      %p75 = scmp.eq.s32.totalorder %s20, 0
      %p76 = por %p74, %p75
      %p77 = scmp.ne.s32.totalorder %s65, %s66
      %p78 = scmp.eq.s32.totalorder %s21, 5
      %p79 = por %p77, %p78
      %p81 = scmp.ne.s32.totalorder %s66, %s80
      %p82 = scmp.eq.s32.totalorder %s21, 0
      %p83 = por %p81, %p82
      %s85 = sadd.s32 %s84, 1
      %p88 = scmp.eq.s32.totalorder %s15, 5
      %p89 = scmp.ne.s32.totalorder %s84, %s86
      %p90 = scmp.eq.s32.totalorder %s15, 0
      %p91 = por %p89, %p90
      %p92 = scmp.ne.s32.totalorder %s84, %s86
      %p93 = scmp.eq.s32.totalorder %s20, 5
      %p94 = por %p92, %p93
      %p95 = scmp.ne.s32.totalorder %s86, %s87
      %p96 = scmp.eq.s32.totalorder %s20, 0
      %p97 = por %p95, %p96
      %p98 = scmp.ne.s32.totalorder %s86, %s87
      %p99 = scmp.eq.s32.totalorder %s21, 5
      %p100 = por %p98, %p99
      %p102 = scmp.ne.s32.totalorder %s87, %s101
      %p103 = scmp.eq.s32.totalorder %s21, 0
      %p104 = por %p102, %p103
      %s106 = sadd.s32 %s105, 1
      %p109 = scmp.eq.s32.totalorder %s15, 5
      %p110 = scmp.ne.s32.totalorder %s105, %s107
      %p111 = scmp.eq.s32.totalorder %s15, 0
      %p112 = por %p110, %p111
      %p113 = scmp.ne.s32.totalorder %s105, %s107
      %p114 = scmp.eq.s32.totalorder %s20, 5
      %p115 = por %p113, %p114
      %p116 = scmp.ne.s32.totalorder %s107, %s108
      %p117 = scmp.eq.s32.totalorder %s20, 0
      %p118 = por %p116, %p117
      %p119 = scmp.ne.s32.totalorder %s107, %s108
      %p120 = scmp.eq.s32.totalorder %s21, 5
      %p121 = por %p119, %p120
      %p123 = scmp.ne.s32.totalorder %s108, %s122
      %p124 = scmp.eq.s32.totalorder %s21, 0
      %p125 = por %p123, %p124
      %s127 = sadd.s32 %s126, 1
      %p130 = scmp.eq.s32.totalorder %s15, 5
      %p131 = scmp.ne.s32.totalorder %s126, %s128
      %p132 = scmp.eq.s32.totalorder %s15, 0
      %p133 = por %p131, %p132
      %p134 = scmp.ne.s32.totalorder %s126, %s128
      %p135 = scmp.eq.s32.totalorder %s20, 5
      %p136 = por %p134, %p135
      %p137 = scmp.ne.s32.totalorder %s128, %s129
      %p138 = scmp.eq.s32.totalorder %s20, 0
      %p139 = por %p137, %p138
      %p140 = scmp.ne.s32.totalorder %s128, %s129
      %p141 = scmp.eq.s32.totalorder %s21, 5
      %p142 = por %p140, %p141
      %p144 = scmp.ne.s32.totalorder %s129, %s143
      %p145 = scmp.eq.s32.totalorder %s21, 0
      %p146 = por %p144, %p145
      %s147 = ssub.s32 %s22, %s34
      %s148 = ssub.s32 %s23, %s30
      %s149 = sor.u32 %s147, %s148
      %p150 = scmp.eq.s32.totalorder %s149, 0
      %s152 = sadd.s32 %s151, 1
      %s153 = scalar_select %p150, %s151, %s152
      %p156 = pneg %p150
      %p157 = scmp.eq.s32.totalorder %s15, 5
      %p158 = por %p156, %p157
      %p159 = scmp.ne.s32.totalorder %s151, %s154
      %p160 = scmp.eq.s32.totalorder %s15, 0
      %p161 = por %p159, %p160
      %p162 = scmp.ne.s32.totalorder %s151, %s154
      %p163 = scmp.eq.s32.totalorder %s20, 5
      %p164 = por %p162, %p163
      %p165 = scmp.ne.s32.totalorder %s154, %s155
      %p166 = scmp.eq.s32.totalorder %s20, 0
      %p167 = por %p165, %p166
      %p168 = scmp.ne.s32.totalorder %s154, %s155
      %p169 = scmp.eq.s32.totalorder %s21, 5
      %p170 = por %p168, %p169
      %p172 = scmp.ne.s32.totalorder %s155, %s171
      %p173 = scmp.eq.s32.totalorder %s21, 0
      %p174 = por %p172, %p173
      %p175 = scmp.le.s32.totalorder 1, %s15
      %p176 = scmp.lt.s32.totalorder %s15, 7
      %p177 = pnand %p175, %p176
      %p178 = pneg %p177
      // Predicated region
      $region9: #{tpu_custom_call.1} parent=5 // pred_check
        _
      $region10: #{tpu_custom_call.1} parent=5 // pred_check_branch
        %180 = sbr.rel (%p177) target = $region12
      $region11: #{tpu_custom_call.1} parent=5 // pred_region
        %s181 = ssub.s32 %s15, 1
        // Predicated region
        $region13: #{tpu_custom_call.1} parent=11 // pred_check
          %p182 = pneg %p76
        $region14: #{tpu_custom_call.1} parent=11 // pred_check_branch
          %184 = sbr.rel (%p182) target = $region16
        $region15: #{tpu_custom_call.1} parent=11 // pred_region
          _
        $region16: #{tpu_custom_call.1} parent=11 // pred_fallthru
          _
        // Predicated region
        $region17: #{tpu_custom_call.1} parent=11 // pred_check
          %p185 = pneg %p97
        $region18: #{tpu_custom_call.1} parent=11 // pred_check_branch
          %187 = sbr.rel (%p185) target = $region20
        $region19: #{tpu_custom_call.1} parent=11 // pred_region
          _
        $region20: #{tpu_custom_call.1} parent=11 // pred_fallthru
          _
        // Predicated region
        $region21: #{tpu_custom_call.1} parent=11 // pred_check
          %p188 = pneg %p118
        $region22: #{tpu_custom_call.1} parent=11 // pred_check_branch
          %190 = sbr.rel (%p188) target = $region24
        $region23: #{tpu_custom_call.1} parent=11 // pred_region
          _
        $region24: #{tpu_custom_call.1} parent=11 // pred_fallthru
          _
        // Predicated region
        $region25: #{tpu_custom_call.1} parent=11 // pred_check
          %p191 = pneg %p139
        $region26: #{tpu_custom_call.1} parent=11 // pred_check_branch
          %193 = sbr.rel (%p191) target = $region28
        $region27: #{tpu_custom_call.1} parent=11 // pred_region
          _
        $region28: #{tpu_custom_call.1} parent=11 // pred_fallthru
          _
      $region12: #{tpu_custom_call.1} parent=5 // pred_fallthru
        _
      %p194 = scmp.lt.s32.totalorder %s15, 6
      // Predicated region
      $region29: #{tpu_custom_call.1} parent=5 // pred_check
        %p195 = pneg %p194
      $region30: #{tpu_custom_call.1} parent=5 // pred_check_branch
        %197 = sbr.rel (%p195) target = $region32
      $region31: #{tpu_custom_call.1} parent=5 // pred_region
        // Predicated region
        $region33: #{tpu_custom_call.1} parent=31 // pred_check
          %p198 = pneg %p49
        $region34: #{tpu_custom_call.1} parent=31 // pred_check_branch
          %200 = sbr.rel (%p198) target = $region36
        $region35: #{tpu_custom_call.1} parent=31 // pred_region
          %s201 = smul.u32 2, %s23
          %s202 = ssub.s32 5, %s201
          %p203 = scmp.lt.s32.totalorder %s202, 2
          %s204 = scalar_select %p203, %s202, 2
          %s205 = smul.u32 4, %s204
          %p206 = scmp.lt.s32.totalorder %s22, 1
          %s207 = scalar_select %p206, %s22, 1
          %p208 = scmp.lt.s32.totalorder %s201, 4
          %s209 = scalar_select %p208, %s201, 4
          %s210 = smul.addr %s207, 5
          %s211 = sadd.s32 %s209, %s210
          %s212 = smul.addr %s211, 4
          %s213 = scalar_lea.vmem %s0, %s212
          %s214 = smul.u32 2, %s23
          %s215 = ssub.s32 5, %s214
          %p216 = scmp.lt.s32.totalorder %s215, 2
          %s217 = scalar_select %p216, %s215, 2
          %s218 = smul.u32 4, %s217
        $region36: #{tpu_custom_call.1} parent=31 // pred_fallthru
          _
      $region32: #{tpu_custom_call.1} parent=5 // pred_fallthru
        _
      %p219 = scmp.le.s32.totalorder 1, %s15
      %p220 = scmp.lt.s32.totalorder %s15, 7
      %p221 = pnand %p219, %p220
      %p222 = pneg %p221
      // Predicated region
      $region37: #{tpu_custom_call.1} parent=5 // pred_check
        _
      $region38: #{tpu_custom_call.1} parent=5 // pred_check_branch
        %224 = sbr.rel (%p221) target = $region40
      $region39: #{tpu_custom_call.1} parent=5 // pred_region
        %s225 = ssub.s32 %s15, 1
        %s226 = smul.u32 2, %s25
        %s227 = ssub.s32 5, %s226
        %p228 = scmp.lt.s32.totalorder %s227, 2
        %s229 = scalar_select %p228, %s227, 2
        %s230 = smul.u32 4, %s229
        %p231 = scmp.lt.s32.totalorder %s24, 1
        %s232 = scalar_select %p231, %s24, 1
        %p233 = scmp.lt.s32.totalorder %s226, 4
        %s234 = scalar_select %p233, %s226, 4
        %s235 = smul.addr %s232, 5
        %s236 = sadd.s32 %s234, %s235
        %s237 = smul.addr %s236, 4
        %s238 = scalar_lea.vmem %s0, %s237
        %p239 = pneg %p55
        %p240 = pneg %p52
        %p241 = pneg %p76
        %p242 = pneg %p73
        %p243 = pneg %p97
        %p244 = pneg %p94
        %p245 = pneg %p118
        %p246 = pneg %p115
        %p247 = pneg %p139
        %p248 = pneg %p136
        %p249 = pneg %p167
        %p250 = pneg %p164
        %s251 = sand.u32 %s154, 1
        %s252 = scalar_lea.sflag [#allocation4], %s251
        %s253 = sand.u32 %s154, 1
        %s254 = smul.addr %s253, 2
        %s255 = scalar_lea.vmem [#allocation3], %s254
        %s256 = smul.u32 2, %s25
        %s257 = ssub.s32 5, %s256
        %p258 = scmp.lt.s32.totalorder %s257, 2
        %s259 = scalar_select %p258, %s257, 2
        %s260 = smul.u32 4, %s259
        %p261 = scmp.lt.s32.totalorder %s24, 1
        %s262 = scalar_select %p261, %s24, 1
        %p263 = scmp.lt.s32.totalorder %s256, 4
        %s264 = scalar_select %p263, %s256, 4
        %s265 = smul.addr %s262, 5
        %s266 = sadd.s32 %s264, %s265
        %s267 = smul.addr %s266, 4
        %s268 = scalar_lea.vmem %s0, %s267
        %s269 = smul.u32 2, %s25
        %s270 = ssub.s32 5, %s269
        %p271 = scmp.lt.s32.totalorder %s270, 2
        %s272 = scalar_select %p271, %s270, 2
        %s273 = smul.u32 4, %s272
        %s274 = smul.u32 2, %s25
        %s275 = ssub.s32 5, %s274
        %p276 = scmp.lt.s32.totalorder %s275, 2
        %s277 = scalar_select %p276, %s275, 2
        %v279 = vld [vmem:[%s268] sm:$0xff]
        %v280 = vld [vmem:[%s1] sm:$0xff]
        %v281 = vld [vmem:[%s1 + $0x8] sm:$0xff]
        %v282 = vld [vmem:[%s1 + $0x10] sm:$0xff]
        %v283 = vld [vmem:[%s1 + $0x18] sm:$0xff]
        %v284 = vld [vmem:[%s1 + $0x20] sm:$0xff]
        %v285 = vld [vmem:[%s1 + $0x28] sm:$0xff]
        %v286 = vld [vmem:[%s1 + $0x30] sm:$0xff]
        %v287 = vld [vmem:[%s1 + $0x38] sm:$0xff]
        %v288 = vld [vmem:[%s1 + $0x40] sm:$0xff]
        %v289 = vld [vmem:[%s1 + $0x48] sm:$0xff]
        %v290 = vld [vmem:[%s1 + $0x50] sm:$0xff]
        %v291 = vld [vmem:[%s1 + $0x58] sm:$0xff]
        %v292 = vld [vmem:[%s1 + $0x60] sm:$0xff]
        %v293 = vld [vmem:[%s1 + $0x68] sm:$0xff]
        %v294 = vld [vmem:[%s1 + $0x70] sm:$0xff]
        %v295 = vld [vmem:[%s1 + $0x78] sm:$0xff]
        %297 = vst [vmem:[#allocation1] ss:$2 sm:$0xff] %v279
        %v298 = vld.sshfl [vmem:[#allocation1] sm:$0xff pattern:$0x75316420]
        %v299 = vld.sshfl [vmem:[#allocation1 + $0x8] sm:$0xff pattern:$0x75316420]
        %v302 = vpack.c.bf16 %v298, %v298
        %v303 = vpack.c.bf16 %v299, %v299
        %v304 = vpack.c.bf16 %v281, %v280
        %v305 = vpack.c.bf16 %v283, %v282
        %v306 = vpack.c.bf16 %v285, %v284
        %v307 = vpack.c.bf16 %v287, %v286
        %v308 = vpack.c.bf16 %v289, %v288
        %v309 = vpack.c.bf16 %v291, %v290
        %v310 = vpack.c.bf16 %v293, %v292
        %v311 = vpack.c.bf16 %v295, %v294
        %v312 = vld [vmem:[%s2] sm:$0xff]
        %v313 = vld [vmem:[%s2 + $0x8] sm:$0xff]
        %v314 = vld [vmem:[%s2 + $0x10] sm:$0xff]
        %v315 = vld [vmem:[%s2 + $0x18] sm:$0xff]
        %v316 = vld [vmem:[%s2 + $0x20] sm:$0xff]
        %v317 = vld [vmem:[%s2 + $0x28] sm:$0xff]
        %v318 = vld [vmem:[%s2 + $0x30] sm:$0xff]
        %v319 = vld [vmem:[%s2 + $0x38] sm:$0xff]
        %v320 = vld [vmem:[%s2 + $0x40] sm:$0xff]
        %v321 = vld [vmem:[%s2 + $0x48] sm:$0xff]
        %v322 = vld [vmem:[%s2 + $0x50] sm:$0xff]
        %v323 = vld [vmem:[%s2 + $0x58] sm:$0xff]
        %v324 = vld [vmem:[%s2 + $0x60] sm:$0xff]
        %v325 = vld [vmem:[%s2 + $0x68] sm:$0xff]
        %v326 = vld [vmem:[%s2 + $0x70] sm:$0xff]
        %v327 = vld [vmem:[%s2 + $0x78] sm:$0xff]
        %329 = vset.pattern.permute.xlu0 0
        %330 = vperm.xlu0 %329, %v312
        %v331 = vpop.permute.xlu0 %330
        %334 = vset.pattern.permute.xlu0 0
        %335 = vperm.xlu0 %334, %v313
        %v336 = vpop.permute.xlu0 %335
        %339 = vset.pattern.permute.xlu0 0
        %340 = vperm.xlu0 %339, %v314
        %v341 = vpop.permute.xlu0 %340
        %344 = vset.pattern.permute.xlu0 0
        %345 = vperm.xlu0 %344, %v315
        %v346 = vpop.permute.xlu0 %345
        %349 = vset.pattern.permute.xlu0 0
        %350 = vperm.xlu0 %349, %v316
        %v351 = vpop.permute.xlu0 %350
        %354 = vset.pattern.permute.xlu0 0
        %355 = vperm.xlu0 %354, %v317
        %v356 = vpop.permute.xlu0 %355
        %359 = vset.pattern.permute.xlu0 0
        %360 = vperm.xlu0 %359, %v318
        %v361 = vpop.permute.xlu0 %360
        %364 = vset.pattern.permute.xlu0 0
        %365 = vperm.xlu0 %364, %v319
        %v366 = vpop.permute.xlu0 %365
        %369 = vset.pattern.permute.xlu0 0
        %370 = vperm.xlu0 %369, %v320
        %v371 = vpop.permute.xlu0 %370
        %374 = vset.pattern.permute.xlu0 0
        %375 = vperm.xlu0 %374, %v321
        %v376 = vpop.permute.xlu0 %375
        %379 = vset.pattern.permute.xlu0 0
        %380 = vperm.xlu0 %379, %v322
        %v381 = vpop.permute.xlu0 %380
        %384 = vset.pattern.permute.xlu0 0
        %385 = vperm.xlu0 %384, %v323
        %v386 = vpop.permute.xlu0 %385
        %389 = vset.pattern.permute.xlu0 0
        %390 = vperm.xlu0 %389, %v324
        %v391 = vpop.permute.xlu0 %390
        %394 = vset.pattern.permute.xlu0 0
        %395 = vperm.xlu0 %394, %v325
        %v396 = vpop.permute.xlu0 %395
        %399 = vset.pattern.permute.xlu0 0
        %400 = vperm.xlu0 %399, %v326
        %v401 = vpop.permute.xlu0 %400
        %404 = vset.pattern.permute.xlu0 0
        %405 = vperm.xlu0 %404, %v327
        %v406 = vpop.permute.xlu0 %405
        %vm408 = vcmask 31744
        %v410 = vsel %vm408, %v304, 0
        %v413 = vsel %vm408, %v305, 0
        %v416 = vsel %vm408, %v306, 0
        %v419 = vsel %vm408, %v307, 0
        %v422 = vsel %vm408, %v308, 0
        %v425 = vsel %vm408, %v309, 0
        %v428 = vsel %vm408, %v310, 0
        %v431 = vsel %vm408, %v311, 0
        %vm433 = vcmask 1041408
        %v435 = vsel %vm433, %v302, 0
        %v438 = vsel %vm433, %v303, 0
        %440 = vmatpush.bf16.msra.mxu0 0
        %441 = vmatpush.bf16.msra.mxu0 0
        %442 = vmatpush.bf16.msra.mxu0 0
        %443 = vmatpush.bf16.msra.mxu0 0
        %444 = vmatpush.bf16.msra.mxu0 0
        %445 = vmatpush.bf16.msra.mxu0 0
        %446 = vmatpush.bf16.msra.mxu0 0
        %447 = vmatpush.bf16.msra.mxu0 %v435
        %448 = vmatmul.bf16.gmra.mxu0 %v410
        %v449 = vpop.f32.mrf.mxu0
        %v450 = vadd.f32 %v331, %v449
        %v451 = vpop.f32.mrf.mxu0
        %v452 = vadd.f32 %v336, %v451
        %453 = vmatmul.bf16.gmra.mxu0 %v413
        %v454 = vpop.f32.mrf.mxu0
        %v455 = vadd.f32 %v341, %v454
        %v456 = vpop.f32.mrf.mxu0
        %v457 = vadd.f32 %v346, %v456
        %458 = vmatmul.bf16.gmra.mxu0 %v416
        %v459 = vpop.f32.mrf.mxu0
        %v460 = vadd.f32 %v351, %v459
        %v461 = vpop.f32.mrf.mxu0
        %v462 = vadd.f32 %v356, %v461
        %463 = vmatmul.bf16.gmra.mxu0 %v419
        %v464 = vpop.f32.mrf.mxu0
        %v465 = vadd.f32 %v361, %v464
        %v466 = vpop.f32.mrf.mxu0
        %v467 = vadd.f32 %v366, %v466
        %468 = vmatmul.bf16.gmra.mxu0 %v422
        %v469 = vpop.f32.mrf.mxu0
        %v470 = vadd.f32 %v371, %v469
        %v471 = vpop.f32.mrf.mxu0
        %v472 = vadd.f32 %v376, %v471
        %473 = vmatmul.bf16.gmra.mxu0 %v425
        %v474 = vpop.f32.mrf.mxu0
        %v475 = vadd.f32 %v381, %v474
        %v476 = vpop.f32.mrf.mxu0
        %v477 = vadd.f32 %v386, %v476
        %478 = vmatmul.bf16.gmra.mxu0 %v428
        %v479 = vpop.f32.mrf.mxu0
        %v480 = vadd.f32 %v391, %v479
        %v481 = vpop.f32.mrf.mxu0
        %v482 = vadd.f32 %v396, %v481
        %483 = vmatmul.bf16.gmra.mxu0 %v431
        %v484 = vpop.f32.mrf.mxu0
        %v485 = vadd.f32 %v401, %v484
        %v486 = vpop.f32.mrf.mxu0
        %v487 = vadd.f32 %v406, %v486
        %488 = vdwg.mxu0
        %489 = vmatpush.bf16.msra.mxu0 0
        %490 = vmatpush.bf16.msra.mxu0 0
        %491 = vmatpush.bf16.msra.mxu0 0
        %492 = vmatpush.bf16.msra.mxu0 0
        %493 = vmatpush.bf16.msra.mxu0 0
        %494 = vmatpush.bf16.msra.mxu0 0
        %495 = vmatpush.bf16.msra.mxu0 0
        %496 = vmatpush.bf16.msra.mxu0 %v438
        %497 = vmatmul.bf16.gmra.mxu0 %v410
        %v498 = vpop.f32.mrf.mxu0
        %v499 = vadd.f32 %v331, %v498
        %v500 = vpop.f32.mrf.mxu0
        %v501 = vadd.f32 %v336, %v500
        %502 = vmatmul.bf16.gmra.mxu0 %v413
        %v503 = vpop.f32.mrf.mxu0
        %v504 = vadd.f32 %v341, %v503
        %v505 = vpop.f32.mrf.mxu0
        %v506 = vadd.f32 %v346, %v505
        %507 = vmatmul.bf16.gmra.mxu0 %v416
        %v508 = vpop.f32.mrf.mxu0
        %v509 = vadd.f32 %v351, %v508
        %v510 = vpop.f32.mrf.mxu0
        %v511 = vadd.f32 %v356, %v510
        %512 = vmatmul.bf16.gmra.mxu0 %v419
        %v513 = vpop.f32.mrf.mxu0
        %v514 = vadd.f32 %v361, %v513
        %v515 = vpop.f32.mrf.mxu0
        %v516 = vadd.f32 %v366, %v515
        %517 = vmatmul.bf16.gmra.mxu0 %v422
        %v518 = vpop.f32.mrf.mxu0
        %v519 = vadd.f32 %v371, %v518
        %v520 = vpop.f32.mrf.mxu0
        %v521 = vadd.f32 %v376, %v520
        %522 = vmatmul.bf16.gmra.mxu0 %v425
        %v523 = vpop.f32.mrf.mxu0
        %v524 = vadd.f32 %v381, %v523
        %v525 = vpop.f32.mrf.mxu0
        %v526 = vadd.f32 %v386, %v525
        %527 = vmatmul.bf16.gmra.mxu0 %v428
        %v528 = vpop.f32.mrf.mxu0
        %v529 = vadd.f32 %v391, %v528
        %v530 = vpop.f32.mrf.mxu0
        %v531 = vadd.f32 %v396, %v530
        %532 = vmatmul.bf16.gmra.mxu0 %v431
        %v533 = vpop.f32.mrf.mxu0
        %v534 = vadd.f32 %v401, %v533
        %v535 = vpop.f32.mrf.mxu0
        %v536 = vadd.f32 %v406, %v535
        %537 = vdwg.mxu0
        %v538 = vmax.f32 %v450, 0.0
        %v539 = vmax.f32 %v499, 0.0
        %v540 = vmax.f32 %v452, 0.0
        %v541 = vmax.f32 %v501, 0.0
        %v542 = vmax.f32 %v455, 0.0
        %v543 = vmax.f32 %v504, 0.0
        %v544 = vmax.f32 %v457, 0.0
        %v545 = vmax.f32 %v506, 0.0
        %v546 = vmax.f32 %v460, 0.0
        %v547 = vmax.f32 %v509, 0.0
        %v548 = vmax.f32 %v462, 0.0
        %v549 = vmax.f32 %v511, 0.0
        %v550 = vmax.f32 %v465, 0.0
        %v551 = vmax.f32 %v514, 0.0
        %v552 = vmax.f32 %v467, 0.0
        %v553 = vmax.f32 %v516, 0.0
        %v554 = vmax.f32 %v470, 0.0
        %v555 = vmax.f32 %v519, 0.0
        %v556 = vmax.f32 %v472, 0.0
        %v557 = vmax.f32 %v521, 0.0
        %v558 = vmax.f32 %v475, 0.0
        %v559 = vmax.f32 %v524, 0.0
        %v560 = vmax.f32 %v477, 0.0
        %v561 = vmax.f32 %v526, 0.0
        %v562 = vmax.f32 %v480, 0.0
        %v563 = vmax.f32 %v529, 0.0
        %v564 = vmax.f32 %v482, 0.0
        %v565 = vmax.f32 %v531, 0.0
        %v566 = vmax.f32 %v485, 0.0
        %v567 = vmax.f32 %v534, 0.0
        %v568 = vmax.f32 %v487, 0.0
        %v569 = vmax.f32 %v536, 0.0
        %v570 = vpack.c.bf16 %v540, %v538
        %v571 = vpack.c.bf16 %v541, %v539
        %v572 = vpack.c.bf16 %v544, %v542
        %v573 = vpack.c.bf16 %v545, %v543
        %v574 = vpack.c.bf16 %v548, %v546
        %v575 = vpack.c.bf16 %v549, %v547
        %v576 = vpack.c.bf16 %v552, %v550
        %v577 = vpack.c.bf16 %v553, %v551
        %v578 = vpack.c.bf16 %v556, %v554
        %v579 = vpack.c.bf16 %v557, %v555
        %v580 = vpack.c.bf16 %v560, %v558
        %v581 = vpack.c.bf16 %v561, %v559
        %v582 = vpack.c.bf16 %v564, %v562
        %v583 = vpack.c.bf16 %v565, %v563
        %v584 = vpack.c.bf16 %v568, %v566
        %v585 = vpack.c.bf16 %v569, %v567
        %v586 = vld [vmem:[%s3] sm:$0x1]
        %v587 = vpack.c.bf16 %v586, %v586
        %s588 = sld [smem:[#allocation2]]
        %v589 = vstv %s588
        %590 = vmatpush.bf16.msra.mxu0 %v584
        %591 = vmatpush.bf16.msra.mxu0 %v582
        %592 = vmatpush.bf16.msra.mxu0 %v580
        %593 = vmatpush.bf16.msra.mxu0 %v578
        %594 = vmatpush.bf16.msra.mxu0 %v576
        %595 = vmatpush.bf16.msra.mxu0 %v574
        %596 = vmatpush.bf16.msra.mxu0 %v572
        %597 = vmatpush.bf16.msra.mxu0 %v570
        %598 = vmatmul.bf16.gmra.mxu0 %v587
        %v599 = vpop.f32.mrf.mxu0
        %v600 = vadd.f32 %v589, %v599
        %v601 = vpop.f32.mrf.mxu0
        %602 = vdwg.mxu0
        %603 = vmatpush.bf16.msra.mxu0 %v585
        %604 = vmatpush.bf16.msra.mxu0 %v583
        %605 = vmatpush.bf16.msra.mxu0 %v581
        %606 = vmatpush.bf16.msra.mxu0 %v579
        %607 = vmatpush.bf16.msra.mxu0 %v577
        %608 = vmatpush.bf16.msra.mxu0 %v575
        %609 = vmatpush.bf16.msra.mxu0 %v573
        %610 = vmatpush.bf16.msra.mxu0 %v571
        %611 = vmatmul.bf16.gmra.mxu0 %v587
        %v612 = vpop.f32.mrf.mxu0
        %v613 = vadd.f32 %v589, %v612
        %v614 = vpop.f32.mrf.mxu0
        %615 = vdwg.mxu0
        %v618 = vrot.slane %v613, 7
        %vm619 = vcmask 1040384
        %v620 = vsel %vm619, %v600, %v618
        %v622 = vlaneseq
        %vm623 = vcmp.ge.s32.totalorder %v622, 0
        %vm624 = vcmp.lt.s32.totalorder %v622, 256
        %vm625 = vmand %vm623, %vm624
        %626 = vst.msk [vmem:[%s255] sm:$0x3] %vm625, %v620
        %s627 = sand.u32 %s154, 1
        %s628 = scalar_lea.sflag [#allocation4], %s627
        %s629 = sand.u32 %s154, 1
        %s630 = smul.addr %s629, 2
        %s631 = scalar_lea.vmem [#allocation3], %s630
        // Predicated region
        $region41: #{tpu_custom_call.1} parent=39 // pred_check
          %p632 = pneg %p164
        $region42: #{tpu_custom_call.1} parent=39 // pred_check_branch
          %634 = sbr.rel (%p632) target = $region44
        $region43: #{tpu_custom_call.1} parent=39 // pred_region
          %s635 = smul.u32 2, %s25
          %s636 = ssub.s32 5, %s635
          %p637 = scmp.lt.s32.totalorder %s636, 2
          %s638 = scalar_select %p637, %s636, 2
          %s639 = ssub.s32 2, %s638
          %s640 = sshll.u32 %s639, 4
          %641 = vsyncadd %s628, %s640
          %p642 = scmp.ne.s32.totalorder 0, %s638
          %s643 = smul.addr %s24, 5
          %s644 = sadd.s32 %s635, %s643
          %s645 = scalar_lea.hbm %s5, %s644
          %s646 = sshll.u32 %s638, 4
          %s647 = sshll.u32 %s631, 4
          %s648 = int_to_ptr.vmem [resolvable:$true] %s647
          %s649 = sshll.u32 %s645, 4
          %s650 = int_to_ptr.hbm [resolvable:$true] %s649
          %652 = dma.vmem_to_hbm [thread:$0]  (%p642), %s648, %s646, %s650, %s628
        $region44: #{tpu_custom_call.1} parent=39 // pred_fallthru
          _
      $region40: #{tpu_custom_call.1} parent=5 // pred_fallthru
        _
      %p653 = scmp.le.s32.totalorder 2, %s15
      // Predicated region
      $region45: #{tpu_custom_call.1} parent=5 // pred_check
        %p654 = pneg %p653
      $region46: #{tpu_custom_call.1} parent=5 // pred_check_branch
        %656 = sbr.rel (%p654) target = $region48
      $region47: #{tpu_custom_call.1} parent=5 // pred_region
        %s657 = ssub.s32 %s15, 2
        // Predicated region
        $region49: #{tpu_custom_call.1} parent=47 // pred_check
          %p658 = pneg %p170
        $region50: #{tpu_custom_call.1} parent=47 // pred_check_branch
          %660 = sbr.rel (%p658) target = $region52
        $region51: #{tpu_custom_call.1} parent=47 // pred_region
          %s661 = sand.u32 %s155, 1
          %s662 = scalar_lea.sflag [#allocation4], %s661
          %s663 = sand.u32 %s155, 1
          %s664 = smul.addr %s663, 2
          %s665 = scalar_lea.vmem [#allocation3], %s664
          %667 = dma.done %s662, 32
        $region52: #{tpu_custom_call.1} parent=47 // pred_fallthru
          _
      $region48: #{tpu_custom_call.1} parent=5 // pred_fallthru
        _
    $region6: #{tpu_custom_call.1} parent=1 // loop_footer
      %s19 = sadd.s32 1, %s15
    $region7: #{tpu_custom_call.1} parent=1 // loop_footer_branch
      %14 = sbr.rel target = $region3
    $region8: #{tpu_custom_call.1} parent=1 // loop_exit
      _
    %668 = vsyncpa [#allocation4], 1
    %s669 = scalar_lea.sflag [#allocation4], 1
    %670 = vsyncpa %s669, 1

</llo_original>
